<compile_context>
chip_gen: v7x
topology: tpu7x:2x2x1
jax: 0.10.0
libtpu: 0.0.40
codegen_flags: <defaults>
</compile_context>

<pallas_src>
import functools

import jax
import jax.numpy as jnp
from jax.experimental import pallas as pl
from jax.experimental.pallas import tpu as pltpu

IGNORE_INDEX = 255
_LANES = 128
_SUBLANES = 8
# ~4 MiB of logits (in the *input* dtype) per grid step (dtype-aware DMA size).
_TARGET_BLOCK_BYTES = 4 * 1024 * 1024
# Cap on the f32 working set of one logits block (kernel math promotes to f32),
# so bf16/fp8 inputs cannot blow up the elementwise temporaries in VMEM.
_MAX_F32_BLOCK_BYTES = 6 * 1024 * 1024


@functools.lru_cache(maxsize=None)
def _vmem_limit_bytes():
    """Generation-aware scoped-VMEM limit (leave headroom on 64 MiB-VMEM v7x)."""
    try:
        cap = int(getattr(pltpu.get_tpu_info(), "vmem_capacity_bytes",
                          128 * 1024 * 1024))
    except Exception:  # conservative fallback if the query is unavailable
        cap = 128 * 1024 * 1024
    if cap <= 96 * 1024 * 1024:          # v7x-class TensorCore (64 MiB VMEM)
        return 48 * 1024 * 1024
    return 64 * 1024 * 1024              # v5e / v6e (128 MiB VMEM)


def _pick_block_units(total_units, unit_pixels, unit_align, c, itemsize):
    """Units per block (lanes for 1-D layout, 128-lane rows for 2-D layout)."""
    by_dma = _TARGET_BLOCK_BYTES // max(1, itemsize * c * unit_pixels)
    by_vmem = _MAX_F32_BLOCK_BYTES // max(1, 4 * c * unit_pixels)
    units = max(unit_align, min(by_dma, by_vmem) // unit_align * unit_align)
    if units >= total_units:
        return int(total_units)          # one full-extent block, no padding
    return int(units)


def _bce_math(x, lbl, in_bounds, ignore_index):
    """x: (C, *pix) f32, lbl: (1, *pix) i32, in_bounds: (1, *pix) bool.

    Returns (masked per-pixel loss (1, *pix) f32, valid mask (1, *pix) f32).
    """
    n_cls = x.shape[0]
    valid = jnp.logical_and(
        jnp.logical_and(lbl != ignore_index, lbl >= 0),
        jnp.logical_and(lbl < n_cls, in_bounds))
    # Zero unspecified out-of-bounds lanes so padding can never make inf/NaN.
    x = jnp.where(in_bounds, x, 0.0)
    cls = jax.lax.broadcasted_iota(jnp.int32, x.shape, 0)
    # x * onehot(label) without materializing the one-hot in f32.
    xt = jnp.where(lbl == cls, x, 0.0)
    # Numerically stable BCE-with-logits; exp/log1p ride the EUP slot.
    # TODO(synk): optional bf16 evaluation of log1p(exp(-|x|)) would relieve
    # the EUP bound on v7x (~1e-3 abs error); kept f32 for exactness.
    loss = jnp.maximum(x, 0.0) - xt + jnp.log1p(jnp.exp(-jnp.abs(x)))
    vf = valid.astype(jnp.float32)
    # Reduce over C first, then apply the pixel mask (saves (C-1)*pix mults).
    pix_loss = jnp.sum(loss, axis=0, keepdims=True) * vf
    return pix_loss, vf


def _write_partial(part_ref, pix_loss, vf):
    row = jax.lax.broadcasted_iota(jnp.int32, (2, _LANES), 0)
    part = jnp.where(row == 0, jnp.sum(pix_loss), jnp.sum(vf))
    part_ref[...] = part.reshape(part_ref.shape)


# ---------------- 2-D pixel layout (H*W % 128 == 0): (1, C, R, 128) ----------
def _partial_kernel_2d(x_ref, lbl_ref, part_ref, *, rows_total, ignore_index):
    x = x_ref[0].astype(jnp.float32)          # (C, R, 128)
    lbl = lbl_ref[0].astype(jnp.int32)        # (1, R, 128)
    r = jax.lax.broadcasted_iota(jnp.int32, lbl.shape, 1)
    in_bounds = (pl.program_id(1) * lbl.shape[1] + r) < rows_total
    pix_loss, vf = _bce_math(x, lbl, in_bounds, ignore_index)
    _write_partial(part_ref, pix_loss, vf)


def _pixel_kernel_2d(x_ref, lbl_ref, pix_ref, *, rows_total, ignore_index):
    x = x_ref[0].astype(jnp.float32)
    lbl = lbl_ref[0].astype(jnp.int32)
    r = jax.lax.broadcasted_iota(jnp.int32, lbl.shape, 1)
    in_bounds = (pl.program_id(1) * lbl.shape[1] + r) < rows_total
    pix_loss, _ = _bce_math(x, lbl, in_bounds, ignore_index)
    pix_ref[...] = pix_loss.reshape(pix_ref.shape)


# ---------------- 1-D pixel fallback: (1, C, TPL) ----------------------------
def _partial_kernel_1d(x_ref, lbl_ref, part_ref, *, hw, ignore_index):
    x = x_ref[0].astype(jnp.float32)          # (C, TPL)
    lbl = lbl_ref[0].astype(jnp.int32)        # (1, TPL)
    lane = jax.lax.broadcasted_iota(jnp.int32, lbl.shape, 1)
    in_bounds = (pl.program_id(1) * lbl.shape[1] + lane) < hw
    pix_loss, vf = _bce_math(x, lbl, in_bounds, ignore_index)
    _write_partial(part_ref, pix_loss, vf)


def _pixel_kernel_1d(x_ref, lbl_ref, pix_ref, *, hw, ignore_index):
    x = x_ref[0].astype(jnp.float32)
    lbl = lbl_ref[0].astype(jnp.int32)
    lane = jax.lax.broadcasted_iota(jnp.int32, lbl.shape, 1)
    in_bounds = (pl.program_id(1) * lbl.shape[1] + lane) < hw
    pix_loss, _ = _bce_math(x, lbl, in_bounds, ignore_index)
    pix_ref[...] = pix_loss.reshape(pix_ref.shape)


@functools.partial(jax.jit, static_argnames=("reduction", "ignore_index"))
def bce_with_logits_ignore_index(inputs, targets, reduction="mean",
                                 ignore_index=IGNORE_INDEX):
    """inputs: (N, C, H, W) float logits; targets: (N, H, W) integer labels."""
    N, C, H, W = inputs.shape
    HW = H * W
    itemsize = jnp.dtype(inputs.dtype).itemsize

    compiler_params = pltpu.CompilerParams(
        dimension_semantics=("parallel", "parallel"),
        vmem_limit_bytes=_vmem_limit_bytes(),
    )

    use_2d = (HW % _LANES == 0)

    if use_2d:
        rows_total = HW // _LANES
        x = inputs.reshape(N, C, rows_total, _LANES)       # pure reshape
        lbl = targets.reshape(N, 1, rows_total, _LANES)    # keep integer dtype
        rows_blk = _pick_block_units(rows_total, _LANES, _SUBLANES, C, itemsize)
        num_tiles = pl.cdiv(rows_total, rows_blk)
        grid = (N, num_tiles)
        in_specs = [
            pl.BlockSpec((1, C, rows_blk, _LANES), lambda n, p: (n, 0, p, 0)),
            pl.BlockSpec((1, 1, rows_blk, _LANES), lambda n, p: (n, 0, p, 0)),
        ]
        if reduction == "none":
            kernel = functools.partial(_pixel_kernel_2d, rows_total=rows_total,
                                       ignore_index=ignore_index)
            pix = pl.pallas_call(
                kernel,
                out_shape=jax.ShapeDtypeStruct((N, 1, rows_total, _LANES),
                                               jnp.float32),
                grid_spec=pltpu.PrefetchScalarGridSpec(
                    num_scalar_prefetch=0, grid=grid, in_specs=in_specs,
                    out_specs=pl.BlockSpec((1, 1, rows_blk, _LANES),
                                           lambda n, p: (n, 0, p, 0))),
                compiler_params=compiler_params,
            )(x, lbl)
            return pix.reshape(N, H, W)
        kernel = functools.partial(_partial_kernel_2d, rows_total=rows_total,
                                   ignore_index=ignore_index)
    else:
        x = inputs.reshape(N, C, HW)
        lbl = targets.reshape(N, 1, HW)
        tpl = _pick_block_units(HW, 1, _LANES, C, itemsize)
        num_tiles = pl.cdiv(HW, tpl)
        grid = (N, num_tiles)
        in_specs = [
            pl.BlockSpec((1, C, tpl), lambda n, p: (n, 0, p)),
            pl.BlockSpec((1, 1, tpl), lambda n, p: (n, 0, p)),
        ]
        if reduction == "none":
            kernel = functools.partial(_pixel_kernel_1d, hw=HW,
                                       ignore_index=ignore_index)
            pix = pl.pallas_call(
                kernel,
                out_shape=jax.ShapeDtypeStruct((N, 1, HW), jnp.float32),
                grid_spec=pltpu.PrefetchScalarGridSpec(
                    num_scalar_prefetch=0, grid=grid, in_specs=in_specs,
                    out_specs=pl.BlockSpec((1, 1, tpl),
                                           lambda n, p: (n, 0, p))),
                compiler_params=compiler_params,
            )(x, lbl)
            return pix.reshape(N, H, W)
        kernel = functools.partial(_partial_kernel_1d, hw=HW,
                                   ignore_index=ignore_index)

    partials = pl.pallas_call(
        kernel,
        out_shape=jax.ShapeDtypeStruct((N, num_tiles, 2, _LANES), jnp.float32),
        grid_spec=pltpu.PrefetchScalarGridSpec(
            num_scalar_prefetch=0, grid=grid, in_specs=in_specs,
            out_specs=pl.BlockSpec((1, 1, 2, _LANES),
                                   lambda n, p: (n, p, 0, 0))),
        compiler_params=compiler_params,
    )(x, lbl)

    loss_sum = jnp.sum(partials[:, :, 0, 0])   # tiny tree-reduce in XLA
    count = jnp.sum(partials[:, :, 1, 0])
    if reduction == "mean":
        return loss_sum / count   # NaN if no valid pixel (matches torch)
    return loss_sum               # 'sum'


def _reference(inputs, targets, reduction="mean", ignore_index=IGNORE_INDEX):
    # Pure-JAX mirror of the PyTorch forward for validation.
    N, C, H, W = inputs.shape
    labels_new = jnp.where(targets != ignore_index, targets, C)
    t = jax.nn.one_hot(labels_new, C + 1, dtype=jnp.float32)[..., :C]
    t = jnp.transpose(t, (0, 3, 1, 2))                       # (N, C, H, W)
    x = inputs.astype(jnp.float32)
    loss = jnp.maximum(x, 0.0) - x * t + jnp.log1p(jnp.exp(-jnp.abs(x)))
    loss = loss.sum(axis=1)                                  # (N, H, W)
    mask = (t.sum(axis=1) != 0).astype(jnp.float32)
    if reduction == "mean":
        return jnp.sum(loss * mask) / jnp.sum(mask)
    elif reduction == "sum":
        return jnp.sum(loss * mask)
    else:
        return loss * mask


if __name__ == "__main__":
    key = jax.random.PRNGKey(0)
    k1, k2, k3, k4, k5, k6 = jax.random.split(key, 6)

    # Main case: (2, 4, 16, 16) -> H*W divisible by 128 (2-D pixel layout).
    N, C, H, W = 2, 4, 16, 16
    logits = jax.random.normal(k1, (N, C, H, W), dtype=jnp.float32)
    labels = jax.random.randint(k2, (N, H, W), 0, C, dtype=jnp.int32)
    ignore_mask = jax.random.uniform(k3, (N, H, W)) < 0.2
    labels = jnp.where(ignore_mask, IGNORE_INDEX, labels)

    out_mean = jax.block_until_ready(
        bce_with_logits_ignore_index(logits, labels, reduction="mean"))
    ref_mean = _reference(logits, labels, reduction="mean")
    assert jnp.allclose(out_mean, ref_mean, atol=1e-5, rtol=1e-5), (
        out_mean, ref_mean)

    out_sum = jax.block_until_ready(
        bce_with_logits_ignore_index(logits, labels, reduction="sum"))
    ref_sum = _reference(logits, labels, reduction="sum")
    assert jnp.allclose(out_sum, ref_sum, atol=1e-3, rtol=1e-5), (
        out_sum, ref_sum)

    out_none = jax.block_until_ready(
        bce_with_logits_ignore_index(logits, labels, reduction="none"))
    ref_none = _reference(logits, labels, reduction="none")
    assert jnp.allclose(out_none, ref_none, atol=1e-5, rtol=1e-5)

    # Odd case: H*W not divisible by 128 (1-D fallback, single ragged block).
    N2, C2, H2, W2 = 1, 3, 10, 10
    logits2 = jax.random.normal(k4, (N2, C2, H2, W2), dtype=jnp.float32)
    labels2 = jax.random.randint(k5, (N2, H2, W2), 0, C2, dtype=jnp.int32)
    labels2 = jnp.where(jax.random.uniform(k6, (N2, H2, W2)) < 0.2,
                        IGNORE_INDEX, labels2)
    out2 = jax.block_until_ready(
        bce_with_logits_ignore_index(logits2, labels2, reduction="mean"))
    ref2 = _reference(logits2, labels2, reduction="mean")
    assert jnp.allclose(out2, ref2, atol=1e-5, rtol=1e-5), (out2, ref2)

    print("KERNEL_OK")
</pallas_src>

<mosaic_0001>
module attributes {stable_mosaic.version = 11 : i64} {
  func.func @_partial_kernel_2d(%arg0: i32, %arg1: i32, %arg2: memref<1x4x2x128xf32, #tpu.memory_space<vmem>>, %arg3: memref<1x1x2x128xi32, #tpu.memory_space<vmem>>, %arg4: memref<1x1x2x128xf32, #tpu.memory_space<vmem>>) attributes {dimension_semantics = [#tpu.dimension_semantics<parallel>, #tpu.dimension_semantics<parallel>], iteration_bounds = array<i64: 2, 1>, scalar_prefetch = 0 : i64, scratch_operands = 0 : i64, tpu.core_type = #tpu.core_type<tc>, window_params = [{transform_indices = @transform_0, window_bounds = array<i64: 1, 4, 2, 128>}, {transform_indices = @transform_1, window_bounds = array<i64: 1, 1, 2, 128>}, {transform_indices = @transform_2, window_bounds = array<i64: 1, 1, 2, 128>}]} {
    %c0 = arith.constant 0 : index
    %c0_0 = arith.constant 0 : index
    %c0_1 = arith.constant 0 : index
    %c0_2 = arith.constant 0 : index
    %0 = vector.load %arg2[%c0, %c0_0, %c0_1, %c0_2] : memref<1x4x2x128xf32, #tpu.memory_space<vmem>>, vector<1x4x2x128xf32>
    %1 = vector.shape_cast %0 : vector<1x4x2x128xf32> to vector<4x2x128xf32>
    %c0_3 = arith.constant 0 : index
    %c0_4 = arith.constant 0 : index
    %c0_5 = arith.constant 0 : index
    %c0_6 = arith.constant 0 : index
    %2 = vector.load %arg3[%c0_3, %c0_4, %c0_5, %c0_6] : memref<1x1x2x128xi32, #tpu.memory_space<vmem>>, vector<1x1x2x128xi32>
    %3 = vector.shape_cast %2 : vector<1x1x2x128xi32> to vector<1x2x128xi32>
    %4 = tpu.iota {dimensions = array<i32: 1>} : vector<1x2x128xi32>
    %c2_i32 = arith.constant 2 : i32
    %5 = arith.muli %arg1, %c2_i32 : i32
    %6 = vector.broadcast %5 : i32 to vector<1x2x128xi32>
    %7 = arith.addi %6, %4 : vector<1x2x128xi32>
    %c2_i32_7 = arith.constant 2 : i32
    %8 = vector.broadcast %c2_i32_7 : i32 to vector<1x2x128xi32>
    %9 = arith.cmpi slt, %7, %8 : vector<1x2x128xi32>
    %c255_i32 = arith.constant 255 : i32
    %10 = vector.broadcast %c255_i32 : i32 to vector<1x2x128xi32>
    %11 = arith.cmpi ne, %3, %10 : vector<1x2x128xi32>
    %c0_i32 = arith.constant 0 : i32
    %12 = vector.broadcast %c0_i32 : i32 to vector<1x2x128xi32>
    %13 = arith.cmpi sge, %3, %12 : vector<1x2x128xi32>
    %14 = arith.andi %11, %13 : vector<1x2x128xi1>
    %c4_i32 = arith.constant 4 : i32
    %15 = vector.broadcast %c4_i32 : i32 to vector<1x2x128xi32>
    %16 = arith.cmpi slt, %3, %15 : vector<1x2x128xi32>
    %17 = arith.andi %16, %9 : vector<1x2x128xi1>
    %18 = arith.andi %14, %17 : vector<1x2x128xi1>
    %cst = arith.constant 0.000000e+00 : f32
    %19 = vector.shape_cast %9 : vector<1x2x128xi1> to vector<1x2x128xi1>
    %20 = vector.broadcast %19 : vector<1x2x128xi1> to vector<4x2x128xi1>
    %21 = vector.broadcast %cst : f32 to vector<4x2x128xf32>
    %22 = arith.select %20, %1, %21 : vector<4x2x128xi1>, vector<4x2x128xf32>
    %23 = tpu.iota {dimensions = array<i32: 0>} : vector<4x2x128xi32>
    %24 = vector.broadcast %3 : vector<1x2x128xi32> to vector<4x2x128xi32>
    %25 = arith.cmpi eq, %24, %23 : vector<4x2x128xi32>
    %cst_8 = arith.constant 0.000000e+00 : f32
    %26 = vector.broadcast %cst_8 : f32 to vector<4x2x128xf32>
    %27 = arith.select %25, %22, %26 : vector<4x2x128xi1>, vector<4x2x128xf32>
    %cst_9 = arith.constant 0.000000e+00 : f32
    %28 = vector.broadcast %cst_9 : f32 to vector<4x2x128xf32>
    %29 = arith.maximumf %22, %28 : vector<4x2x128xf32>
    %30 = arith.subf %29, %27 : vector<4x2x128xf32>
    %31 = math.absf %22 : vector<4x2x128xf32>
    %cst_10 = arith.constant 0.000000e+00 : f32
    %32 = vector.broadcast %cst_10 : f32 to vector<4x2x128xf32>
    %33 = arith.subf %32, %31 : vector<4x2x128xf32>
    %34 = math.exp %33 : vector<4x2x128xf32>
    %35 = math.log1p %34 : vector<4x2x128xf32>
    %36 = arith.addf %30, %35 : vector<4x2x128xf32>
    %37 = arith.extui %18 : vector<1x2x128xi1> to vector<1x2x128xi32>
    %38 = arith.sitofp %37 : vector<1x2x128xi32> to vector<1x2x128xf32>
    %cst_11 = arith.constant dense<0.000000e+00> : vector<2x128xf32>
    %39 = vector.multi_reduction <add>, %36, %cst_11 [0] : vector<4x2x128xf32> to vector<2x128xf32>
    %40 = vector.shape_cast %39 : vector<2x128xf32> to vector<1x2x128xf32>
    %41 = arith.mulf %40, %38 : vector<1x2x128xf32>
    %42 = tpu.iota {dimensions = array<i32: 0>} : vector<2x128xi32>
    %c0_i32_12 = arith.constant 0 : i32
    %43 = vector.broadcast %c0_i32_12 : i32 to vector<2x128xi32>
    %44 = arith.cmpi eq, %42, %43 : vector<2x128xi32>
    %45 = vector.shape_cast %41 : vector<1x2x128xf32> to vector<1x1x2x128xf32>
    %cst_13 = arith.constant dense<0.000000e+00> : vector<1xf32>
    %46 = vector.multi_reduction <add>, %45, %cst_13 [1, 2, 3] : vector<1x1x2x128xf32> to vector<1xf32>
    %47 = vector.shape_cast %46 : vector<1xf32> to vector<1x1x1x1xf32>
    %48 = vector.extract %47[0, 0, 0, 0] : f32 from vector<1x1x1x1xf32>
    %49 = vector.shape_cast %38 : vector<1x2x128xf32> to vector<1x1x2x128xf32>
    %cst_14 = arith.constant dense<0.000000e+00> : vector<1xf32>
    %50 = vector.multi_reduction <add>, %49, %cst_14 [1, 2, 3] : vector<1x1x2x128xf32> to vector<1xf32>
    %51 = vector.shape_cast %50 : vector<1xf32> to vector<1x1x1x1xf32>
    %52 = vector.extract %51[0, 0, 0, 0] : f32 from vector<1x1x1x1xf32>
    %53 = vector.broadcast %48 : f32 to vector<2x128xf32>
    %54 = vector.broadcast %52 : f32 to vector<2x128xf32>
    %55 = arith.select %44, %53, %54 : vector<2x128xi1>, vector<2x128xf32>
    %56 = vector.shape_cast %55 : vector<2x128xf32> to vector<1x1x2x128xf32>
    %c0_15 = arith.constant 0 : index
    %c0_16 = arith.constant 0 : index
    %c0_17 = arith.constant 0 : index
    %c0_18 = arith.constant 0 : index
    %57 = vector.load %arg4[%c0_15, %c0_16, %c0_17, %c0_18] : memref<1x1x2x128xf32, #tpu.memory_space<vmem>>, vector<1x1x2x128xf32>
    tpu.vector_store %arg4[%c0_15, %c0_16, %c0_17, %c0_18], %56 {strides = array<i32>} : memref<1x1x2x128xf32, #tpu.memory_space<vmem>>, vector<1x1x2x128xf32>,
    return
  }
  func.func @transform_0(%arg0: i32, %arg1: i32) -> (i32, i32, i32, i32) {
    %c0_i32 = arith.constant 0 : i32
    %c0_i32_0 = arith.constant 0 : i32
    %c0_i32_1 = arith.constant 0 : i32
    return %arg0, %c0_i32, %arg1, %c0_i32_0 : i32, i32, i32, i32
  }
  func.func @transform_1(%arg0: i32, %arg1: i32) -> (i32, i32, i32, i32) {
    %c0_i32 = arith.constant 0 : i32
    %c0_i32_0 = arith.constant 0 : i32
    %c0_i32_1 = arith.constant 0 : i32
    return %arg0, %c0_i32, %arg1, %c0_i32_0 : i32, i32, i32, i32
  }
  func.func @transform_2(%arg0: i32, %arg1: i32) -> (i32, i32, i32, i32) {
    %c0_i32 = arith.constant 0 : i32
    %c0_i32_0 = arith.constant 0 : i32
    %c0_i32_1 = arith.constant 0 : i32
    return %arg0, %arg1, %c0_i32, %c0_i32_0 : i32, i32, i32, i32
  }
}

</mosaic_0001>

<llo_original>
// kernel: bce_with_logits_ignore_index.1
$region0: #{bce_with_logits_ignore_index.1}
  #allocation0 [shape = 'u32[]', space=smem, size = 0x4, offset = 0x4, fixed_abs, tag = 'smem constant byte address 0x4 - core index']
  #allocation1 [shape = 'u32[144,128]{1,0:T(1,128)}', space=vmem, size = 0x12000, scoped, tag = 'internal scratch']
  %s0 = inlined_call_operand.hbm [shape: f32[2,4,2,128], index: 0, kind: input, shape index: {}]
  %s1 = inlined_call_operand.hbm [shape: s32[2,1,2,128], index: 1, kind: input, shape index: {}]
  %s2 = inlined_call_operand.hbm [shape: f32[2,1,2,128], index: 2, kind: output, shape index: {}]
  %s3 = sld [smem:[#allocation0]]
  $region49: #{bce_with_logits_ignore_index.1} parent=0
    _
  %s5 = ssub.s32 1, %s3
  %s6 = scalar_select 0, %s5, %s3
  $region1: #{bce_with_logits_ignore_index.1} parent=0
    #allocation2 [shape = 'u8[8192]{0}', space=vmem, size = 0x2000, scoped, tag = 'input window, operand 0']
    #allocation3 [shape = 's32[2]{0}', space=sflag, size = 0x8, scoped, tag = 'scoped memory for bce_with_logits_ignore_index.1']
    #allocation4 [shape = 's32[2]{0}', space=sflag, size = 0x8, scoped, tag = 'scoped memory for bce_with_logits_ignore_index.1']
    #allocation5 [shape = 'u8[2048]{0}', space=vmem, size = 0x800, scoped, tag = 'input window, operand 1']
    #allocation6 [shape = 's32[2]{0}', space=sflag, size = 0x8, scoped, tag = 'scoped memory for bce_with_logits_ignore_index.1']
    #allocation7 [shape = 'u8[2048]{0}', space=vmem, size = 0x800, scoped, tag = 'output window, operand 0']
    %7 = vsyncpa [#allocation3], 0
    %s8 = scalar_lea.sflag [#allocation3], 1
    %9 = vsyncpa %s8, 0
    %10 = vsyncpa [#allocation6], 0
    %s11 = scalar_lea.sflag [#allocation6], 1
    %12 = vsyncpa %s11, 0
    %13 = vsyncpa [#allocation4], 0
    %s14 = scalar_lea.sflag [#allocation4], 1
    %15 = vsyncpa %s14, 0
    loop: start=0, step=1, limit=4
    $region2: #{bce_with_logits_ignore_index.1} parent=1 // loop_pre_header
      _
    $region3: #{bce_with_logits_ignore_index.1} parent=1 // loop_header
      %s17 = sphi 0, %s21
      %p18 = scmp.ge.s32.totalorder %s17, 4
      %s24 = sphi 0, %s36
      %s25 = sphi 0, %s32
      %s26 = sphi 0, %s24
      %s27 = sphi 0, %s25
      %s28 = sphi 0, %s26
      %s29 = sphi 0, %s27
      %s41 = sphi 0, %s43
      %s44 = sphi 0, %s41
      %s45 = sphi 0, %s44
      %s61 = sphi 0, %s45
      %s69 = sphi 0, %s71
      %s72 = sphi 0, %s69
      %s73 = sphi 0, %s72
      %s89 = sphi 0, %s73
      %s97 = sphi 0, %s99
      %s100 = sphi 0, %s97
      %s101 = sphi 0, %s100
      %s117 = sphi 0, %s101
    $region4: #{bce_with_logits_ignore_index.1} parent=1 // loop_header_branch
      %20 = sbr.rel (%p18) target = $region8
    $region5: #{bce_with_logits_ignore_index.1} parent=1 // loop_body
      %s22 = ssub.s32 %s17, 1
      %s23 = ssub.s32 %s17, 2
      %s30 = sadd.s32 1, %s25
      %p31 = scmp.ge.s32.totalorder %s30, 1
      %s32 = scalar_select %p31, 0, %s30
      %s33 = sadd.s32 1, %s24
      %s34 = scalar_select %p31, %s33, %s24
      %p35 = scmp.ge.s32.totalorder %s34, 2
      %s36 = scalar_select %p35, 0, %s34
      %s37 = ssub.s32 %s24, %s36
      %s38 = ssub.s32 %s25, %s32
      %s39 = sor.u32 %s37, %s38
      %p40 = scmp.eq.s32.totalorder %s39, 0
      %s42 = sadd.s32 %s41, 1
      %s43 = scalar_select %p40, %s41, %s42
      %p46 = pneg %p40
      %p47 = scmp.eq.s32.totalorder %s17, 1
      %p48 = por %p46, %p47
      %p49 = scmp.ne.s32.totalorder %s41, %s44
      %p50 = scmp.eq.s32.totalorder %s17, 0
      %p51 = por %p49, %p50
      %p52 = scmp.ne.s32.totalorder %s41, %s44
      %p53 = scmp.eq.s32.totalorder %s22, 1
      %p54 = por %p52, %p53
      %p55 = scmp.ne.s32.totalorder %s44, %s45
      %p56 = scmp.eq.s32.totalorder %s22, 0
      %p57 = por %p55, %p56
      %p58 = scmp.ne.s32.totalorder %s44, %s45
      %p59 = scmp.eq.s32.totalorder %s23, 1
      %p60 = por %p58, %p59
      %p62 = scmp.ne.s32.totalorder %s45, %s61
      %p63 = scmp.eq.s32.totalorder %s23, 0
      %p64 = por %p62, %p63
      %s65 = ssub.s32 %s24, %s36
      %s66 = ssub.s32 %s25, %s32
      %s67 = sor.u32 %s65, %s66
      %p68 = scmp.eq.s32.totalorder %s67, 0
      %s70 = sadd.s32 %s69, 1
      %s71 = scalar_select %p68, %s69, %s70
      %p74 = pneg %p68
      %p75 = scmp.eq.s32.totalorder %s17, 1
      %p76 = por %p74, %p75
      %p77 = scmp.ne.s32.totalorder %s69, %s72
      %p78 = scmp.eq.s32.totalorder %s17, 0
      %p79 = por %p77, %p78
      %p80 = scmp.ne.s32.totalorder %s69, %s72
      %p81 = scmp.eq.s32.totalorder %s22, 1
      %p82 = por %p80, %p81
      %p83 = scmp.ne.s32.totalorder %s72, %s73
      %p84 = scmp.eq.s32.totalorder %s22, 0
      %p85 = por %p83, %p84
      %p86 = scmp.ne.s32.totalorder %s72, %s73
      %p87 = scmp.eq.s32.totalorder %s23, 1
      %p88 = por %p86, %p87
      %p90 = scmp.ne.s32.totalorder %s73, %s89
      %p91 = scmp.eq.s32.totalorder %s23, 0
      %p92 = por %p90, %p91
      %s93 = ssub.s32 %s24, %s36
      %s94 = ssub.s32 %s25, %s32
      %s95 = sor.u32 %s93, %s94
      %p96 = scmp.eq.s32.totalorder %s95, 0
      %s98 = sadd.s32 %s97, 1
      %s99 = scalar_select %p96, %s97, %s98
      %p102 = pneg %p96
      %p103 = scmp.eq.s32.totalorder %s17, 1
      %p104 = por %p102, %p103
      %p105 = scmp.ne.s32.totalorder %s97, %s100
      %p106 = scmp.eq.s32.totalorder %s17, 0
      %p107 = por %p105, %p106
      %p108 = scmp.ne.s32.totalorder %s97, %s100
      %p109 = scmp.eq.s32.totalorder %s22, 1
      %p110 = por %p108, %p109
      %p111 = scmp.ne.s32.totalorder %s100, %s101
      %p112 = scmp.eq.s32.totalorder %s22, 0
      %p113 = por %p111, %p112
      %p114 = scmp.ne.s32.totalorder %s100, %s101
      %p115 = scmp.eq.s32.totalorder %s23, 1
      %p116 = por %p114, %p115
      %p118 = scmp.ne.s32.totalorder %s101, %s117
      %p119 = scmp.eq.s32.totalorder %s23, 0
      %p120 = por %p118, %p119
      %p121 = scmp.le.s32.totalorder 1, %s17
      %p122 = scmp.lt.s32.totalorder %s17, 3
      %p123 = pnand %p121, %p122
      %p124 = pneg %p123
      // Predicated region
      $region9: #{bce_with_logits_ignore_index.1} parent=5 // pred_check
        _
      $region10: #{bce_with_logits_ignore_index.1} parent=5 // pred_check_branch
        %126 = sbr.rel (%p123) target = $region12
      $region11: #{bce_with_logits_ignore_index.1} parent=5 // pred_region
        %s127 = ssub.s32 %s17, 1
      $region12: #{bce_with_logits_ignore_index.1} parent=5 // pred_fallthru
        _
      %p128 = scmp.lt.s32.totalorder %s17, 2
      // Predicated region
      $region13: #{bce_with_logits_ignore_index.1} parent=5 // pred_check
        %p129 = pneg %p128
      $region14: #{bce_with_logits_ignore_index.1} parent=5 // pred_check_branch
        %131 = sbr.rel (%p129) target = $region16
      $region15: #{bce_with_logits_ignore_index.1} parent=5 // pred_region
        // Predicated region
        $region17: #{bce_with_logits_ignore_index.1} parent=15 // pred_check
          %p132 = pneg %p51
        $region18: #{bce_with_logits_ignore_index.1} parent=15 // pred_check_branch
          %134 = sbr.rel (%p132) target = $region20
        $region19: #{bce_with_logits_ignore_index.1} parent=15 // pred_region
          %s135 = sand.u32 %s41, 1
          %s136 = scalar_lea.sflag [#allocation3], %s135
          %s137 = sand.u32 %s41, 1
          %s138 = smul.addr %s137, 8
          %s139 = scalar_lea.vmem [#allocation2], %s138
          %s141 = ssub.s32 128, 128
          %142 = vsyncadd %s136, %s141
          %s143 = smul.addr %s24, 4
          %s144 = sadd.s32 %s25, %s143
          %s145 = smul.addr %s144, 32
          %s146 = scalar_lea.hbm %s0, %s145
          %s147 = sshll.u32 %s139, 4
          %s148 = int_to_ptr.vmem [resolvable:$true] %s147
          %153 = dma.hbm_to_vmem [thread:$0]  %s146, 128, %s148, %s136, 32, 32, 2
        $region20: #{bce_with_logits_ignore_index.1} parent=15 // pred_fallthru
          _
        // Predicated region
        $region21: #{bce_with_logits_ignore_index.1} parent=15 // pred_check
          %p154 = pneg %p79
        $region22: #{bce_with_logits_ignore_index.1} parent=15 // pred_check_branch
          %156 = sbr.rel (%p154) target = $region24
        $region23: #{bce_with_logits_ignore_index.1} parent=15 // pred_region
          %s157 = sand.u32 %s69, 1
          %s158 = scalar_lea.sflag [#allocation6], %s157
          %s159 = sand.u32 %s69, 1
          %s160 = smul.addr %s159, 2
          %s161 = scalar_lea.vmem [#allocation5], %s160
          %s163 = ssub.s32 32, 32
          %164 = vsyncadd %s158, %s163
          %s165 = sadd.s32 %s25, %s24
          %s166 = smul.addr %s165, 32
          %s167 = scalar_lea.hbm %s1, %s166
          %s169 = sshll.u32 %s161, 4
          %s170 = int_to_ptr.vmem [resolvable:$true] %s169
          %172 = dma.hbm_to_vmem [thread:$0]  %s167, 32, %s170, %s158
        $region24: #{bce_with_logits_ignore_index.1} parent=15 // pred_fallthru
          _
      $region16: #{bce_with_logits_ignore_index.1} parent=5 // pred_fallthru
        _
      %p173 = scmp.le.s32.totalorder 1, %s17
      %p174 = scmp.lt.s32.totalorder %s17, 3
      %p175 = pnand %p173, %p174
      %p176 = pneg %p175
      // Predicated region
      $region25: #{bce_with_logits_ignore_index.1} parent=5 // pred_check
        _
      $region26: #{bce_with_logits_ignore_index.1} parent=5 // pred_check_branch
        %178 = sbr.rel (%p175) target = $region28
      $region27: #{bce_with_logits_ignore_index.1} parent=5 // pred_region
        %s179 = ssub.s32 %s17, 1
        %s180 = sand.u32 %s44, 1
        %s181 = scalar_lea.sflag [#allocation3], %s180
        %s182 = sand.u32 %s44, 1
        %s183 = smul.addr %s182, 8
        %s184 = scalar_lea.vmem [#allocation2], %s183
        // Predicated region
        $region29: #{bce_with_logits_ignore_index.1} parent=27 // pred_check
          %p185 = pneg %p57
        $region30: #{bce_with_logits_ignore_index.1} parent=27 // pred_check_branch
          %187 = sbr.rel (%p185) target = $region32
        $region31: #{bce_with_logits_ignore_index.1} parent=27 // pred_region
          %188 = dma.done %s181, 128
        $region32: #{bce_with_logits_ignore_index.1} parent=27 // pred_fallthru
          _
        %s189 = sand.u32 %s72, 1
        %s190 = scalar_lea.sflag [#allocation6], %s189
        %s191 = sand.u32 %s72, 1
        %s192 = smul.addr %s191, 2
        %s193 = scalar_lea.vmem [#allocation5], %s192
        // Predicated region
        $region33: #{bce_with_logits_ignore_index.1} parent=27 // pred_check
          %p194 = pneg %p85
        $region34: #{bce_with_logits_ignore_index.1} parent=27 // pred_check_branch
          %196 = sbr.rel (%p194) target = $region36
        $region35: #{bce_with_logits_ignore_index.1} parent=27 // pred_region
          %197 = dma.done %s190, 32
        $region36: #{bce_with_logits_ignore_index.1} parent=27 // pred_fallthru
          _
        %s198 = sand.u32 %s44, 1
        %s199 = scalar_lea.sflag [#allocation3], %s198
        %s200 = sand.u32 %s44, 1
        %s201 = smul.addr %s200, 8
        %s202 = scalar_lea.vmem [#allocation2], %s201
        %p203 = pneg %p57
        %p204 = pneg %p54
        %s205 = sand.u32 %s72, 1
        %s206 = scalar_lea.sflag [#allocation6], %s205
        %s207 = sand.u32 %s72, 1
        %s208 = smul.addr %s207, 2
        %s209 = scalar_lea.vmem [#allocation5], %s208
        %p210 = pneg %p85
        %p211 = pneg %p82
        %p212 = pneg %p113
        %p213 = pneg %p110
        %s214 = sand.u32 %s100, 1
        %s215 = scalar_lea.sflag [#allocation4], %s214
        %s216 = sand.u32 %s100, 1
        %s217 = smul.addr %s216, 2
        %s218 = scalar_lea.vmem [#allocation7], %s217
        %v219 = vld [vmem:[%s184] sm:$0x3]
        %v220 = vld [vmem:[%s184 + $0x2] sm:$0x3]
        %v221 = vld [vmem:[%s184 + $0x4] sm:$0x3]
        %v222 = vld [vmem:[%s184 + $0x6] sm:$0x3]
        %v223 = vld [vmem:[%s193] sm:$0x3]
        %v224 = vlaneseq
        %v225 = vshrl.u32 %v224, 7
        %s226 = smul.u32 %s27, 2
        %v227 = vstv %s226
        %v228 = vadd.s32 %v227, %v225
        %vm229 = vcmp.lt.s32.totalorder %v228, 2
        %vm230 = vcmp.ne.s32.totalorder %v223, 255
        %vm231 = vcmp.ge.s32.totalorder %v223, 0
        %vm232 = vmand %vm230, %vm231
        %vm233 = vcmp.lt.s32.totalorder %v223, 4
        %vm234 = vmand %vm233, %vm229
        %vm235 = vmand %vm232, %vm234
        %v236 = vsel %vm229, 1, 0
        %vm237 = vcmp.eq.s32.totalorder %v236, 1
        %v238 = vsel %vm237, %v219, 0.0
        %v239 = vsel %vm237, %v220, 0.0
        %v240 = vsel %vm237, %v221, 0.0
        %v241 = vsel %vm237, %v222, 0.0
        %vm242 = vcmp.eq.s32.totalorder %v223, 0
        %vm243 = vcmp.eq.s32.totalorder %v223, 1
        %vm244 = vcmp.eq.s32.totalorder %v223, 2
        %vm245 = vcmp.eq.s32.totalorder %v223, 3
        %v246 = vsel %vm242, %v238, 0.0
        %v247 = vsel %vm243, %v239, 0.0
        %v248 = vsel %vm244, %v240, 0.0
        %v249 = vsel %vm245, %v241, 0.0
        %v250 = vmax.f32 %v238, 0.0
        %v251 = vmax.f32 %v239, 0.0
        %v252 = vmax.f32 %v240, 0.0
        %v253 = vmax.f32 %v241, 0.0
        %v254 = vsub.f32 %v250, %v246
        %v255 = vsub.f32 %v251, %v247
        %v256 = vsub.f32 %v252, %v248
        %v257 = vsub.f32 %v253, %v249
        %v258 = vand.u32 2147483647, %v238
        %v259 = vand.u32 2147483647, %v239
        %v260 = vand.u32 2147483647, %v240
        %v261 = vand.u32 2147483647, %v241
        %v262 = vsub.f32 0.0, %v258
        %v263 = vsub.f32 0.0, %v259
        %v264 = vsub.f32 0.0, %v260
        %v265 = vsub.f32 0.0, %v261
        %v266 = vmul.f32 %v262, 1.442695
        %v267 = vpow.pop %v266
        %v268 = vmul.f32 %v263, 1.442695
        %v269 = vpow.pop %v268
        %v270 = vmul.f32 %v264, 1.442695
        %v271 = vpow.pop %v270
        %v272 = vmul.f32 %v265, 1.442695
        %v273 = vpow.pop %v272
        %v274 = vadd.f32 %v267, 1.0
        %v275 = vlog2.pop %v274
        %v276 = vmul.f32 %v275, 0.6931472
        %v277 = vmul.f32 -0.5, %v267
        %v278 = vadd.f32 %v277, 1.0
        %v279 = vmul.f32 %v278, %v267
        %v280 = vand.u32 2147483647, %v267
        %vm281 = vcmp.lt.f32.partialorder %v280, 0.0004427343
        %v282 = vsel %vm281, %v279, %v276
        %v283 = vadd.f32 %v269, 1.0
        %v284 = vlog2.pop %v283
        %v285 = vmul.f32 %v284, 0.6931472
        %v286 = vmul.f32 -0.5, %v269
        %v287 = vadd.f32 %v286, 1.0
        %v288 = vmul.f32 %v287, %v269
        %v289 = vand.u32 2147483647, %v269
        %vm290 = vcmp.lt.f32.partialorder %v289, 0.0004427343
        %v291 = vsel %vm290, %v288, %v285
        %v292 = vadd.f32 %v271, 1.0
        %v293 = vlog2.pop %v292
        %v294 = vmul.f32 %v293, 0.6931472
        %v295 = vmul.f32 -0.5, %v271
        %v296 = vadd.f32 %v295, 1.0
        %v297 = vmul.f32 %v296, %v271
        %v298 = vand.u32 2147483647, %v271
        %vm299 = vcmp.lt.f32.partialorder %v298, 0.0004427343
        %v300 = vsel %vm299, %v297, %v294
        %v301 = vadd.f32 %v273, 1.0
        %v302 = vlog2.pop %v301
        %v303 = vmul.f32 %v302, 0.6931472
        %v304 = vmul.f32 -0.5, %v273
        %v305 = vadd.f32 %v304, 1.0
        %v306 = vmul.f32 %v305, %v273
        %v307 = vand.u32 2147483647, %v273
        %vm308 = vcmp.lt.f32.partialorder %v307, 0.0004427343
        %v309 = vsel %vm308, %v306, %v303
        %v310 = vadd.f32 %v254, %v282
        %v311 = vadd.f32 %v255, %v291
        %v312 = vadd.f32 %v256, %v300
        %v313 = vadd.f32 %v257, %v309
        %v314 = vsel %vm235, 1, 0
        %v315 = vcvt.s32.f32 %v314
        %vm316 = vcmask 1041408
        %v317 = vsel %vm316, %v310, 0.0
        %v318 = vsel %vm316, %v311, 0.0
        %v319 = vadd.f32 %v317, %v318
        %v320 = vsel %vm316, %v312, 0.0
        %v321 = vadd.f32 %v319, %v320
        %v322 = vsel %vm316, %v313, 0.0
        %v323 = vadd.f32 %v321, %v322
        %v324 = vmul.f32 %v323, %v315
        %vm325 = vcmp.eq.s32.totalorder %v225, 0
        %v326 = vsel %vm316, %v324, 0.0
        %327 = vadd.xlane.f32.xlu0 %v326
        %v328 = vpop.xlane.xlu0 %327
        %v329 = vrot.slane %v328, 4
        %v330 = vadd.f32 %v328, %v329
        %v331 = vrot.slane %v330, 2
        %v332 = vadd.f32 %v330, %v331
        %v333 = vrot.slane %v332, 1
        %v334 = vadd.f32 %v332, %v333
        %s335 = vtos %v334
        %v336 = vsel %vm316, %v315, 0.0
        %337 = vadd.xlane.f32.xlu0 %v336
        %v338 = vpop.xlane.xlu0 %337
        %v339 = vrot.slane %v338, 4
        %v340 = vadd.f32 %v338, %v339
        %v341 = vrot.slane %v340, 2
        %v342 = vadd.f32 %v340, %v341
        %v343 = vrot.slane %v342, 1
        %v344 = vadd.f32 %v342, %v343
        %s345 = vtos %v344
        %v346 = vstv %s335
        %v347 = vstv %s345
        %v348 = vsel %vm325, %v346, %v347
        %349 = vst [vmem:[%s218] sm:$0x3] %v348
        %s350 = sand.u32 %s100, 1
        %s351 = scalar_lea.sflag [#allocation4], %s350
        %s352 = sand.u32 %s100, 1
        %s353 = smul.addr %s352, 2
        %s354 = scalar_lea.vmem [#allocation7], %s353
        // Predicated region
        $region37: #{bce_with_logits_ignore_index.1} parent=27 // pred_check
          %p355 = pneg %p110
        $region38: #{bce_with_logits_ignore_index.1} parent=27 // pred_check_branch
          %357 = sbr.rel (%p355) target = $region40
        $region39: #{bce_with_logits_ignore_index.1} parent=27 // pred_region
          %s359 = ssub.s32 32, 32
          %360 = vsyncadd %s351, %s359
          %s361 = sadd.s32 %s27, %s26
          %s362 = smul.addr %s361, 32
          %s363 = scalar_lea.hbm %s2, %s362
          %s365 = sshll.u32 %s354, 4
          %s366 = int_to_ptr.vmem [resolvable:$true] %s365
          %368 = dma.vmem_to_hbm [thread:$0]  %s366, 32, %s363, %s351
        $region40: #{bce_with_logits_ignore_index.1} parent=27 // pred_fallthru
          _
      $region28: #{bce_with_logits_ignore_index.1} parent=5 // pred_fallthru
        _
      %p369 = scmp.le.s32.totalorder 2, %s17
      // Predicated region
      $region41: #{bce_with_logits_ignore_index.1} parent=5 // pred_check
        %p370 = pneg %p369
      $region42: #{bce_with_logits_ignore_index.1} parent=5 // pred_check_branch
        %372 = sbr.rel (%p370) target = $region44
      $region43: #{bce_with_logits_ignore_index.1} parent=5 // pred_region
        %s373 = ssub.s32 %s17, 2
        // Predicated region
        $region45: #{bce_with_logits_ignore_index.1} parent=43 // pred_check
          %p374 = pneg %p116
        $region46: #{bce_with_logits_ignore_index.1} parent=43 // pred_check_branch
          %376 = sbr.rel (%p374) target = $region48
        $region47: #{bce_with_logits_ignore_index.1} parent=43 // pred_region
          %s377 = sand.u32 %s101, 1
          %s378 = scalar_lea.sflag [#allocation4], %s377
          %s379 = sand.u32 %s101, 1
          %s380 = smul.addr %s379, 2
          %s381 = scalar_lea.vmem [#allocation7], %s380
          %382 = dma.done %s378, 32
        $region48: #{bce_with_logits_ignore_index.1} parent=43 // pred_fallthru
          _
      $region44: #{bce_with_logits_ignore_index.1} parent=5 // pred_fallthru
        _
    $region6: #{bce_with_logits_ignore_index.1} parent=1 // loop_footer
      %s21 = sadd.s32 1, %s17
    $region7: #{bce_with_logits_ignore_index.1} parent=1 // loop_footer_branch
      %16 = sbr.rel target = $region3
    $region8: #{bce_with_logits_ignore_index.1} parent=1 // loop_exit
      _
    %383 = vsyncpa [#allocation3], 1
    %s384 = scalar_lea.sflag [#allocation3], 1
    %385 = vsyncpa %s384, 1
    %386 = vsyncpa [#allocation6], 1
    %s387 = scalar_lea.sflag [#allocation6], 1
    %388 = vsyncpa %s387, 1
    %389 = vsyncpa [#allocation4], 1
    %s390 = scalar_lea.sflag [#allocation4], 1
    %391 = vsyncpa %s390, 1

</llo_original>
